<compile_context>
chip_gen: v7x
topology: tpu7x:2x2x1
jax: 0.10.0
libtpu: 0.0.40
codegen_flags: <defaults>
</compile_context>

<pallas_src>
import functools

import jax
import jax.numpy as jnp
from jax.experimental import pallas as pl
from jax.experimental.pallas import tpu as pltpu

_LANE = 128
# Resident tile footprint budget: x input block + output block (double
# buffered) + lane-padded (rows, 1) weight/bias blocks.  Sized against v7x's
# 64 MiB physical / 32 MiB default-scoped VMEM so the same choice also works
# on v5e/v6e (128 MiB) while being large enough to hit the HBM roofline.
_TILE_BUDGET_BYTES = 24 * 1024 * 1024
# Scoped VMEM limit handed to Mosaic (v5e's default scoped limit is 16 MiB).
_VMEM_LIMIT_BYTES = 40 * 1024 * 1024


def _round_up(n, m):
    return -(-n // m) * m


def _row_min(dtype):
    """Dtype-aware sublane tile minimum: f32 -> 8, bf16 -> 16, int8/fp8 -> 32."""
    itemsize = jnp.dtype(dtype).itemsize
    if itemsize >= 4:
        return 8
    if itemsize == 2:
        return 16
    return 32


def _adain_fused_kernel(x_ref, w_ref, b_ref, o_ref, *, eps, inv_n):
    # x_ref: (tile_bc, hw_pad); w_ref / b_ref: (tile_bc, 1) float32.
    x = x_ref[...].astype(jnp.float32)
    # Single-pass statistics.  Zero-padded lane columns contribute nothing to
    # sum/sumsq; dividing by the true H*W (inv_n) keeps stats exact.  Clamp
    # var >= 0 since E[x^2] - mean^2 can go slightly negative numerically.
    s = jnp.sum(x, axis=-1, keepdims=True)
    sq = jnp.sum(x * x, axis=-1, keepdims=True)
    mean = s * inv_n
    var = jnp.maximum(sq * inv_n - mean * mean, 0.0)
    # Fused affine: y = x*scale + shift -> 2 VPU ops/element instead of 4;
    # rsqrt goes to the EUP slot (free alongside the VPU work).
    scale = jax.lax.rsqrt(var + eps) * w_ref[...]
    shift = b_ref[...] - mean * scale
    o_ref[...] = (x * scale + shift).astype(o_ref.dtype)


def _adain_stats_kernel(x_ref, w_ref, b_ref, scale_ref, shift_ref,
                        sum_sc, sq_sc, *, eps, inv_n):
    # Grid: (bc tiles, hw tiles); hw axis is the (last, 'arbitrary') reduction.
    j = pl.program_id(1)

    @pl.when(j == 0)
    def _init():
        sum_sc[...] = jnp.zeros_like(sum_sc)
        sq_sc[...] = jnp.zeros_like(sq_sc)

    x = x_ref[...].astype(jnp.float32)
    sum_sc[...] += jnp.sum(x, axis=-1, keepdims=True)
    sq_sc[...] += jnp.sum(x * x, axis=-1, keepdims=True)

    @pl.when(j == pl.num_programs(1) - 1)
    def _finalize():
        mean = sum_sc[...] * inv_n
        var = jnp.maximum(sq_sc[...] * inv_n - mean * mean, 0.0)
        scale = jax.lax.rsqrt(var + eps) * w_ref[...]
        scale_ref[...] = scale
        shift_ref[...] = b_ref[...] - mean * scale


def _adain_apply_kernel(x_ref, scale_ref, shift_ref, o_ref):
    x = x_ref[...].astype(jnp.float32)
    o_ref[...] = (x * scale_ref[...] + shift_ref[...]).astype(o_ref.dtype)


def adaptive_instance_norm_2d(x, weight, bias, *, eps=1e-5):
    """AdaIN forward. x: (B, C, H, W); weight, bias: (B*C,). Returns (B, C, H, W)."""
    B, C, H, W = x.shape
    BC, HW = B * C, H * W
    assert weight.shape == (BC,) and bias.shape == (BC,)

    itemsize = jnp.dtype(x.dtype).itemsize
    row_min = _row_min(x.dtype)
    hw_pad = _round_up(HW, _LANE)          # lane-dense loads/stores
    bc_ceil = _round_up(BC, row_min)

    # Per-row resident bytes for the fused path: x in + out (double-buffered)
    # plus the (rows, 1) w/b blocks, which are lane-padded to 128 in VMEM.
    wb_row_bytes = 2 * 2 * _LANE * 4
    row_bytes = hw_pad * itemsize * 4 + wb_row_bytes

    w2d = weight.astype(jnp.float32).reshape(BC, 1)
    b2d = bias.astype(jnp.float32).reshape(BC, 1)
    inv_n = 1.0 / float(HW)

    if row_min * row_bytes <= _TILE_BUDGET_BYTES:
        # ---------------- fused path: whole H*W row resident per block -------
        tile_bc = min(
            bc_ceil,
            max(row_min, (_TILE_BUDGET_BYTES // row_bytes) // row_min * row_min),
        )
        # Keep the 'parallel' grid >= 2 steps when there is enough work so
        # v7x's two TensorCores both get a shard.
        if bc_ceil >= 2 * row_min and tile_bc >= bc_ceil:
            tile_bc = max(row_min, (bc_ceil // 2) // row_min * row_min)
        bc_pad = _round_up(BC, tile_bc)

        x2d = x.reshape(BC, HW)
        if bc_pad != BC or hw_pad != HW:
            x2d = jnp.pad(x2d, ((0, bc_pad - BC), (0, hw_pad - HW)))
        if bc_pad != BC:
            w2d = jnp.pad(w2d, ((0, bc_pad - BC), (0, 0)))
            b2d = jnp.pad(b2d, ((0, bc_pad - BC), (0, 0)))

        out2d = pl.pallas_call(
            functools.partial(_adain_fused_kernel, eps=float(eps), inv_n=inv_n),
            out_shape=jax.ShapeDtypeStruct((bc_pad, hw_pad), x.dtype),
            grid_spec=pltpu.PrefetchScalarGridSpec(
                num_scalar_prefetch=0,
                grid=(bc_pad // tile_bc,),
                in_specs=[
                    pl.BlockSpec((tile_bc, hw_pad), lambda i: (i, 0)),
                    pl.BlockSpec((tile_bc, 1), lambda i: (i, 0)),
                    pl.BlockSpec((tile_bc, 1), lambda i: (i, 0)),
                ],
                out_specs=pl.BlockSpec((tile_bc, hw_pad), lambda i: (i, 0)),
            ),
            compiler_params=pltpu.CompilerParams(
                dimension_semantics=("parallel",),
                vmem_limit_bytes=_VMEM_LIMIT_BYTES,
            ),
            cost_estimate=pl.CostEstimate(
                flops=5 * BC * HW,
                transcendentals=BC,
                bytes_accessed=2 * BC * HW * itemsize + 8 * BC,
            ),
        )(x2d, w2d, b2d)

        if bc_pad != BC or hw_pad != HW:
            out2d = out2d[:BC, :HW]
        return out2d.reshape(B, C, H, W)

    # ---------------- split path: H*W too large for a resident row -----------
    # Stats pass (HW-tiled, accumulated in VMEM scratch) + apply pass.
    tile_bc = min(bc_ceil, max(row_min, (512 // row_min) * row_min))

    def _wb_bytes(rows):
        return 2 * 2 * rows * _LANE * 4

    while (tile_bc > row_min
           and tile_bc * _LANE * itemsize * 4 + _wb_bytes(tile_bc) > _TILE_BUDGET_BYTES):
        tile_bc -= row_min
    tile_hw = (_TILE_BUDGET_BYTES - _wb_bytes(tile_bc)) // (tile_bc * itemsize * 4)
    tile_hw = min(max(_LANE, tile_hw // _LANE * _LANE), hw_pad)
    bc_pad = _round_up(BC, tile_bc)
    hw_pad = _round_up(HW, tile_hw)
    n_bc, n_hw = bc_pad // tile_bc, hw_pad // tile_hw

    x2d = x.reshape(BC, HW)
    if bc_pad != BC or hw_pad != HW:
        x2d = jnp.pad(x2d, ((0, bc_pad - BC), (0, hw_pad - HW)))
    if bc_pad != BC:
        w2d = jnp.pad(w2d, ((0, bc_pad - BC), (0, 0)))
        b2d = jnp.pad(b2d, ((0, bc_pad - BC), (0, 0)))

    scale, shift = pl.pallas_call(
        functools.partial(_adain_stats_kernel, eps=float(eps), inv_n=inv_n),
        out_shape=(jax.ShapeDtypeStruct((bc_pad, 1), jnp.float32),
                   jax.ShapeDtypeStruct((bc_pad, 1), jnp.float32)),
        grid_spec=pltpu.PrefetchScalarGridSpec(
            num_scalar_prefetch=0,
            grid=(n_bc, n_hw),
            in_specs=[
                pl.BlockSpec((tile_bc, tile_hw), lambda i, j: (i, j)),
                pl.BlockSpec((tile_bc, 1), lambda i, j: (i, 0)),
                pl.BlockSpec((tile_bc, 1), lambda i, j: (i, 0)),
            ],
            out_specs=(pl.BlockSpec((tile_bc, 1), lambda i, j: (i, 0)),
                       pl.BlockSpec((tile_bc, 1), lambda i, j: (i, 0))),
            scratch_shapes=[pltpu.VMEM((tile_bc, 1), jnp.float32),
                            pltpu.VMEM((tile_bc, 1), jnp.float32)],
        ),
        compiler_params=pltpu.CompilerParams(
            dimension_semantics=("parallel", "arbitrary"),
            vmem_limit_bytes=_VMEM_LIMIT_BYTES,
        ),
        cost_estimate=pl.CostEstimate(
            flops=3 * BC * HW,
            transcendentals=BC,
            bytes_accessed=BC * HW * itemsize + 16 * BC,
        ),
    )(x2d, w2d, b2d)

    out2d = pl.pallas_call(
        _adain_apply_kernel,
        out_shape=jax.ShapeDtypeStruct((bc_pad, hw_pad), x.dtype),
        grid_spec=pltpu.PrefetchScalarGridSpec(
            num_scalar_prefetch=0,
            grid=(n_bc, n_hw),
            in_specs=[
                pl.BlockSpec((tile_bc, tile_hw), lambda i, j: (i, j)),
                pl.BlockSpec((tile_bc, 1), lambda i, j: (i, 0)),
                pl.BlockSpec((tile_bc, 1), lambda i, j: (i, 0)),
            ],
            out_specs=pl.BlockSpec((tile_bc, tile_hw), lambda i, j: (i, j)),
        ),
        compiler_params=pltpu.CompilerParams(
            dimension_semantics=("parallel", "parallel"),
            vmem_limit_bytes=_VMEM_LIMIT_BYTES,
        ),
        cost_estimate=pl.CostEstimate(
            flops=2 * BC * HW,
            transcendentals=0,
            bytes_accessed=2 * BC * HW * itemsize + 8 * BC,
        ),
    )(x2d, scale, shift)

    if bc_pad != BC or hw_pad != HW:
        out2d = out2d[:BC, :HW]
    return out2d.reshape(B, C, H, W)


def _reference(x, weight, bias, eps=1e-5):
    B, C, H, W = x.shape
    x2d = x.reshape(B * C, H * W).astype(jnp.float32)
    mean = jnp.mean(x2d, axis=-1, keepdims=True)
    var = jnp.mean((x2d - mean) ** 2, axis=-1, keepdims=True)
    y = (x2d - mean) / jnp.sqrt(var + eps)
    y = y * weight[:, None] + bias[:, None]
    return y.reshape(B, C, H, W).astype(x.dtype)


if __name__ == "__main__":
    key = jax.random.PRNGKey(0)
    kx, kw, kb, kx2 = jax.random.split(key, 4)

    # Primary check: shapes implied by the module (batch=2, channels=4, 16x16).
    B, C, H, W = 2, 4, 16, 16
    x = jax.random.normal(kx, (B, C, H, W), dtype=jnp.float32)
    # AdaIN weight/bias are assigned externally (e.g. by a style MLP).
    weight = jax.random.normal(kw, (B * C,), dtype=jnp.float32) * 0.5 + 1.0
    bias = jax.random.normal(kb, (B * C,), dtype=jnp.float32) * 0.1

    out = jax.block_until_ready(adaptive_instance_norm_2d(x, weight, bias, eps=1e-5))
    ref = _reference(x, weight, bias, eps=1e-5)
    assert out.shape == (B, C, H, W)
    assert jnp.allclose(out, ref, atol=1e-4, rtol=1e-4), "mismatch vs reference"

    # Secondary check: non-128-multiple spatial size exercises the lane-padding
    # path (H*W = 100 -> padded to 128, stats still divide by the true H*W).
    x2 = jax.random.normal(kx2, (B, C, 10, 10), dtype=jnp.float32)
    out2 = jax.block_until_ready(adaptive_instance_norm_2d(x2, weight, bias, eps=1e-5))
    ref2 = _reference(x2, weight, bias, eps=1e-5)
    assert jnp.allclose(out2, ref2, atol=1e-4, rtol=1e-4), "mismatch (padded HW)"

    print("KERNEL_OK")
</pallas_src>

<mosaic_0001>
module attributes {stable_mosaic.version = 11 : i64} {
  func.func @_adain_fused_kernel(%arg0: i32, %arg1: memref<8x256xf32, #tpu.memory_space<vmem>>, %arg2: memref<8x1xf32, #tpu.memory_space<vmem>>, %arg3: memref<8x1xf32, #tpu.memory_space<vmem>>, %arg4: memref<8x256xf32, #tpu.memory_space<vmem>>) attributes {dimension_semantics = [#tpu.dimension_semantics<parallel>], iteration_bounds = array<i64: 1>, scalar_prefetch = 0 : i64, scratch_operands = 0 : i64, tpu.core_type = #tpu.core_type<tc>, window_params = [{transform_indices = @transform_0, window_bounds = array<i64: 8, 256>}, {transform_indices = @transform_1, window_bounds = array<i64: 8, 1>}, {transform_indices = @transform_2, window_bounds = array<i64: 8, 1>}, {transform_indices = @transform_3, window_bounds = array<i64: 8, 256>}]} {
    %c0 = arith.constant 0 : index
    %c0_0 = arith.constant 0 : index
    %0 = vector.load %arg1[%c0, %c0_0] : memref<8x256xf32, #tpu.memory_space<vmem>>, vector<8x256xf32>
    %cst = arith.constant dense<0.000000e+00> : vector<8xf32>
    %1 = vector.multi_reduction <add>, %0, %cst [1] : vector<8x256xf32> to vector<8xf32>
    %2 = vector.shape_cast %1 : vector<8xf32> to vector<8x1xf32>
    %3 = arith.mulf %0, %0 : vector<8x256xf32>
    %cst_1 = arith.constant dense<0.000000e+00> : vector<8xf32>
    %4 = vector.multi_reduction <add>, %3, %cst_1 [1] : vector<8x256xf32> to vector<8xf32>
    %5 = vector.shape_cast %4 : vector<8xf32> to vector<8x1xf32>
    %cst_2 = arith.constant 3.906250e-03 : f32
    %6 = vector.broadcast %cst_2 : f32 to vector<8x1xf32>
    %7 = arith.mulf %2, %6 : vector<8x1xf32>
    %cst_3 = arith.constant 3.906250e-03 : f32
    %8 = vector.broadcast %cst_3 : f32 to vector<8x1xf32>
    %9 = arith.mulf %5, %8 : vector<8x1xf32>
    %10 = arith.mulf %7, %7 : vector<8x1xf32>
    %11 = arith.subf %9, %10 : vector<8x1xf32>
    %cst_4 = arith.constant 0.000000e+00 : f32
    %12 = vector.broadcast %cst_4 : f32 to vector<8x1xf32>
    %13 = arith.maximumf %11, %12 : vector<8x1xf32>
    %cst_5 = arith.constant 9.99999974E-6 : f32
    %14 = vector.broadcast %cst_5 : f32 to vector<8x1xf32>
    %15 = arith.addf %13, %14 : vector<8x1xf32>
    %16 = math.rsqrt %15 : vector<8x1xf32>
    %c0_6 = arith.constant 0 : index
    %c0_7 = arith.constant 0 : index
    %17 = vector.load %arg2[%c0_6, %c0_7] : memref<8x1xf32, #tpu.memory_space<vmem>>, vector<8x1xf32>
    %18 = arith.mulf %16, %17 : vector<8x1xf32>
    %c0_8 = arith.constant 0 : index
    %c0_9 = arith.constant 0 : index
    %19 = vector.load %arg3[%c0_8, %c0_9] : memref<8x1xf32, #tpu.memory_space<vmem>>, vector<8x1xf32>
    %20 = arith.mulf %7, %18 : vector<8x1xf32>
    %21 = arith.subf %19, %20 : vector<8x1xf32>
    %22 = vector.broadcast %18 : vector<8x1xf32> to vector<8x256xf32>
    %23 = arith.mulf %0, %22 : vector<8x256xf32>
    %24 = vector.broadcast %21 : vector<8x1xf32> to vector<8x256xf32>
    %25 = arith.addf %23, %24 : vector<8x256xf32>
    %c0_10 = arith.constant 0 : index
    %c0_11 = arith.constant 0 : index
    %26 = vector.load %arg4[%c0_10, %c0_11] : memref<8x256xf32, #tpu.memory_space<vmem>>, vector<8x256xf32>
    tpu.vector_store %arg4[%c0_10, %c0_11], %25 {strides = array<i32>} : memref<8x256xf32, #tpu.memory_space<vmem>>, vector<8x256xf32>,
    return
  }
  func.func @transform_0(%arg0: i32) -> (i32, i32) {
    %c0_i32 = arith.constant 0 : i32
    %c0_i32_0 = arith.constant 0 : i32
    return %arg0, %c0_i32 : i32, i32
  }
  func.func @transform_1(%arg0: i32) -> (i32, i32) {
    %c0_i32 = arith.constant 0 : i32
    %c0_i32_0 = arith.constant 0 : i32
    return %arg0, %c0_i32 : i32, i32
  }
  func.func @transform_2(%arg0: i32) -> (i32, i32) {
    %c0_i32 = arith.constant 0 : i32
    %c0_i32_0 = arith.constant 0 : i32
    return %arg0, %c0_i32 : i32, i32
  }
  func.func @transform_3(%arg0: i32) -> (i32, i32) {
    %c0_i32 = arith.constant 0 : i32
    %c0_i32_0 = arith.constant 0 : i32
    return %arg0, %c0_i32 : i32, i32
  }
}

</mosaic_0001>

<llo_original>
// kernel: tpu_custom_call.1
$region0: #{tpu_custom_call.1}
  #allocation0 [shape = 'u32[]', space=smem, size = 0x4, offset = 0x4, fixed_abs, tag = 'smem constant byte address 0x4 - core index']
  #allocation1 [shape = 'u32[144,128]{1,0:T(1,128)}', space=vmem, size = 0x12000, scoped, tag = 'internal scratch']
  %s0 = inlined_call_operand.vmem [shape: f32[8,256], index: 0, kind: input, shape index: {}]
  %s1 = inlined_call_operand.vmem [shape: f32[8,1], index: 1, kind: input, shape index: {}]
  %s2 = inlined_call_operand.vmem [shape: f32[8,1], index: 2, kind: input, shape index: {}]
  %s3 = inlined_call_operand.hbm [shape: f32[8,256], index: 3, kind: output, shape index: {}]
  %s4 = sld [smem:[#allocation0]]
  $region22: #{tpu_custom_call.1} parent=0
    _
  %s6 = ssub.s32 1, %s4
  %s7 = scalar_select 0, %s6, %s4
  $region1: #{tpu_custom_call.1} parent=0
    #allocation2 [shape = 'u8[8192]{0}', space=vmem, size = 0x2000, scoped, tag = 'output window, operand 0, single buffered']
    #allocation3 [shape = 's32[1]{0}', space=sflag, size = 0x4, scoped, tag = 'scoped memory for tpu_custom_call.1']
    %8 = vsyncpa [#allocation3], 0
    // Predicated region
    $region2: #{tpu_custom_call.1} parent=1 // pred_check
      _
    $region3: #{tpu_custom_call.1} parent=1 // pred_check_branch
      %10 = sbr.rel (0) target = $region5
    $region4: #{tpu_custom_call.1} parent=1 // pred_region
      _
    $region5: #{tpu_custom_call.1} parent=1 // pred_fallthru
      _
    // Predicated region
    $region6: #{tpu_custom_call.1} parent=1 // pred_check
      _
    $region7: #{tpu_custom_call.1} parent=1 // pred_check_branch
      %12 = sbr.rel (0) target = $region9
    $region8: #{tpu_custom_call.1} parent=1 // pred_region
      _
    $region9: #{tpu_custom_call.1} parent=1 // pred_fallthru
      _
    // Predicated region
    $region10: #{tpu_custom_call.1} parent=1 // pred_check
      _
    $region11: #{tpu_custom_call.1} parent=1 // pred_check_branch
      %14 = sbr.rel (0) target = $region13
    $region12: #{tpu_custom_call.1} parent=1 // pred_region
      _
    $region13: #{tpu_custom_call.1} parent=1 // pred_fallthru
      _
    %v15 = vld [vmem:[%s0] sm:$0xff]
    %v16 = vld [vmem:[%s0 + $0x8] sm:$0xff]
    %v17 = vadd.f32 %v15, %v16
    %18 = vadd.xlane.f32.xlu0 %v17
    %v19 = vpop.xlane.xlu0 %18
    %v20 = vmul.f32 %v15, %v15
    %v21 = vmul.f32 %v16, %v16
    %v22 = vadd.f32 %v20, %v21
    %23 = vadd.xlane.f32.xlu0 %v22
    %v24 = vpop.xlane.xlu0 %23
    %v25 = vmul.f32 %v19, 0.00390625
    %v26 = vmul.f32 %v24, 0.00390625
    %v27 = vmul.f32 %v25, %v25
    %v28 = vsub.f32 %v26, %v27
    %v29 = vmax.f32 %v28, 0.0
    %v30 = vadd.f32 %v29, 1e-05
    %v31 = vrsqrt.pop %v30
    %v32 = vld [vmem:[%s1] sm:$0xff]
    %v33 = vmul.f32 %v31, %v32
    %v34 = vld [vmem:[%s2] sm:$0xff]
    %v35 = vmul.f32 %v25, %v33
    %v36 = vsub.f32 %v34, %v35
    %38 = vset.pattern.permute.xlu0 0
    %39 = vperm.xlu0 %38, %v33
    %v40 = vpop.permute.xlu0 %39
    %v42 = vmul.f32 %v15, %v40
    %v43 = vmul.f32 %v16, %v40
    %45 = vset.pattern.permute.xlu0 0
    %46 = vperm.xlu0 %45, %v36
    %v47 = vpop.permute.xlu0 %46
    %v49 = vadd.f32 %v42, %v47
    %v50 = vadd.f32 %v43, %v47
    %51 = vst [vmem:[#allocation2] sm:$0xff] %v49
    %52 = vst [vmem:[#allocation2 + $0x8] sm:$0xff] %v50
    // Predicated region
    $region14: #{tpu_custom_call.1} parent=1 // pred_check
      _
    $region15: #{tpu_custom_call.1} parent=1 // pred_check_branch
      %54 = sbr.rel (0) target = $region17
    $region16: #{tpu_custom_call.1} parent=1 // pred_region
      %s56 = ssub.s32 256, 256
      %57 = vsyncadd [#allocation3], %s56
      %s59 = sshll.u32 [#allocation2], 4
      %s60 = int_to_ptr.vmem [resolvable:$true] %s59
      %62 = dma.vmem_to_hbm [thread:$0]  %s60, 256, %s3, [#allocation3]
    $region17: #{tpu_custom_call.1} parent=1 // pred_fallthru
      _
    // Predicated region
    $region18: #{tpu_custom_call.1} parent=1 // pred_check
      _
    $region19: #{tpu_custom_call.1} parent=1 // pred_check_branch
      %64 = sbr.rel (0) target = $region21
    $region20: #{tpu_custom_call.1} parent=1 // pred_region
      %65 = dma.done [#allocation3], 256
    $region21: #{tpu_custom_call.1} parent=1 // pred_fallthru
      _
    %66 = vsyncpa [#allocation3], 1

</llo_original>
